<compile_context>
chip_gen: v6e
topology: v6e:2x2x1
jax: 0.10.0
libtpu: 0.0.40
codegen_flags: <defaults>
</compile_context>

<pallas_src>
import functools

import jax
import jax.numpy as jnp
from jax.experimental import pallas as pl
from jax.experimental.pallas import tpu as pltpu


def _round_up(v, m):
    return -(-int(v) // m) * m


def _conv1d_kernel(x_ref, halo_ref, w_ref, b_ref, o_ref, col_ref, *,
                   ksize, dilation, t_tile, c_in):
    # x_ref:    (1, C_in, t_tile)        input tile (pre-padded, lane-dense)
    # halo_ref: (1, 1, C_in, H_blk)      next-128-columns halo (lane-dense)
    # w_ref:    (C_out, K*C_in)          fused im2col weights (resident)
    # b_ref:    (C_out, 1)               bias (f32)
    # o_ref:    (1, C_out, t_tile)       output tile (lane-dense)
    # col_ref:  (K*C_in, t_tile)         im2col staging scratch (VMEM)

    # Stage the K dilated shifts.  Slab k holds x[:, k*dilation : k*dilation+t_tile].
    # The bulk store of each slab starts at column 0 (lane-aligned); only the
    # tiny (C_in, k*dilation) tail coming from the halo is a masked store.
    col_ref[:c_in, :] = x_ref[0]                       # tap 0: aligned copy
    for k in range(1, ksize):
        off = k * dilation
        r0 = k * c_in
        col_ref[r0:r0 + c_in, :t_tile - off] = x_ref[0, :, off:]
        col_ref[r0:r0 + c_in, t_tile - off:] = halo_ref[0, 0, :, :off]

    # Single fused MXU matmul over the K*C_in contraction, accumulated in f32.
    acc = jnp.dot(w_ref[...], col_ref[...], preferred_element_type=jnp.float32)
    o_ref[0] = (acc + b_ref[...]).astype(o_ref.dtype)


def conv1d_with_initialization(x, weight, bias, *, stride=1, padding=0,
                               dilation=1, t_tile=2048,
                               vmem_limit_bytes=48 * 1024 * 1024):
    """Conv1d forward. x: (B, C_in, T), weight: (C_out, C_in, K), bias: (C_out,)."""
    if stride != 1:
        # TODO(synk): strided Conv1d not implemented (module default stride=1).
        raise NotImplementedError("stride != 1 not supported")
    B, C_in, T = x.shape
    C_out, C_in_w, K = weight.shape
    assert C_in_w == C_in, "groups != 1 not supported"

    H = dilation * (K - 1)                      # extra input columns per tile
    T_out = T + 2 * padding - H
    assert T_out > 0

    # Lane-dense time tile (multiple of 128), no bigger than needed.
    t_tile = _round_up(min(int(t_tile), _round_up(T_out, 128)), 128)
    num_tiles = pl.cdiv(T_out, t_tile)
    # v7x has 2 TensorCores sharded over the "parallel" grid axes: make sure
    # there are at least 2 balanced grid steps when the problem allows it.
    if B * num_tiles < 2 and T_out > 128:
        t_tile = _round_up(-(-T_out // 2), 128)
        num_tiles = pl.cdiv(T_out, t_tile)
    T_out_pad = num_tiles * t_tile
    assert H < t_tile, "dilation*(kernel_size-1) must be smaller than the tile"

    # Lane-dense halo width (>= H, multiple of 128).
    H_blk = _round_up(max(H, 1), 128)

    # HBM-side padding: left conv pad + enough zeros on the right so every
    # tile and its halo are fully in-bounds (last-tile tail columns computed
    # from zeros are sliced off below).
    L = T_out_pad + H_blk
    x_pad = jnp.pad(x, ((0, 0), (0, 0), (padding, L - padding - T)))

    # Right-halo windows (128 lanes) for every tile, gathered HBM-side (tiny).
    starts = (jnp.arange(num_tiles, dtype=jnp.int32) + 1) * t_tile
    idx = starts[:, None] + jnp.arange(H_blk, dtype=jnp.int32)[None, :]
    halo = jnp.transpose(jnp.take(x_pad, idx, axis=2), (0, 2, 1, 3))  # (B,nt,C_in,H_blk)

    # Fused im2col weights: (C_out, C_in, K) -> (C_out, K*C_in), row order
    # [tap0 ch0..chC-1, tap1 ch0.., ...] matching the scratch layout above.
    w2 = jnp.transpose(weight, (0, 2, 1)).reshape(C_out, K * C_in).astype(x.dtype)
    b2 = bias.reshape(C_out, 1).astype(jnp.float32)

    kern = functools.partial(_conv1d_kernel, ksize=K, dilation=dilation,
                             t_tile=t_tile, c_in=C_in)

    out = pl.pallas_call(
        kern,
        out_shape=jax.ShapeDtypeStruct((B, C_out, T_out_pad), x.dtype),
        grid_spec=pltpu.PrefetchScalarGridSpec(
            num_scalar_prefetch=0,
            grid=(B, num_tiles),
            in_specs=[
                pl.BlockSpec((1, C_in, t_tile), lambda bi, tj: (bi, 0, tj)),     # x tile
                pl.BlockSpec((1, 1, C_in, H_blk), lambda bi, tj: (bi, tj, 0, 0)),  # halo
                pl.BlockSpec((C_out, K * C_in), lambda bi, tj: (0, 0)),          # weights
                pl.BlockSpec((C_out, 1), lambda bi, tj: (0, 0)),                 # bias
            ],
            out_specs=pl.BlockSpec((1, C_out, t_tile), lambda bi, tj: (bi, 0, tj)),
            scratch_shapes=[pltpu.VMEM((K * C_in, t_tile), x.dtype)],
        ),
        compiler_params=pltpu.CompilerParams(
            # batch and time tiles are fully independent -> megacore-parallel.
            dimension_semantics=("parallel", "parallel"),
            vmem_limit_bytes=vmem_limit_bytes,
        ),
    )(x_pad, halo, w2, b2)

    return out if T_out_pad == T_out else out[:, :, :T_out]


def _orthogonal_conv_weight(key, c_out, c_in, ksize):
    """Deterministic orthogonal init (gain=1), mimicking nn.init.orthogonal_."""
    rows, cols = c_out, c_in * ksize
    a = jax.random.normal(key, (max(rows, cols), min(rows, cols)), jnp.float32)
    q, r = jnp.linalg.qr(a)
    q = q * jnp.sign(jnp.diagonal(r))
    if rows < cols:
        q = q.T
    return q.reshape(c_out, c_in, ksize)


def _reference(x, weight, bias, padding, dilation):
    out = jax.lax.conv_general_dilated(
        x, weight,
        window_strides=(1,),
        padding=[(padding, padding)],
        rhs_dilation=(dilation,),
        dimension_numbers=("NCH", "OIH", "NCH"),
        precision=jax.lax.Precision.HIGHEST,
    )
    return out + bias.reshape(1, -1, 1)


def _run_case(key, *, B, C_in, C_out, T, K, dilation, padding, t_tile=2048):
    kx, kw, kb = jax.random.split(key, 3)
    x = jax.random.normal(kx, (B, C_in, T), jnp.float32)
    weight = _orthogonal_conv_weight(kw, C_out, C_in, K)          # (C_out, C_in, K)
    bound = 1.0 / ((C_in * K) ** 0.5)
    bias = jax.random.uniform(kb, (C_out,), jnp.float32, minval=-bound, maxval=bound)

    out = conv1d_with_initialization(x, weight, bias, padding=padding,
                                     dilation=dilation, t_tile=t_tile)
    out = jax.block_until_ready(out)
    ref = jax.block_until_ready(_reference(x, weight, bias, padding, dilation))

    assert out.shape == ref.shape, (out.shape, ref.shape)
    # Default MXU precision for f32 inputs is bf16-class -> loose tolerance.
    assert jnp.allclose(out, ref, atol=5e-2, rtol=5e-2), (
        "mismatch vs reference, max abs diff = %f" % float(jnp.max(jnp.abs(out - ref))))


if __name__ == "__main__":
    key = jax.random.PRNGKey(0)

    # "same" dilated conv (WaveGrad-style config), C_out != C_in, single tile.
    _run_case(jax.random.fold_in(key, 0),
              B=2, C_in=16, C_out=32, T=512, K=3, dilation=2, padding=2)

    # multi-tile path with a ragged remainder (T_out not a multiple of the tile).
    _run_case(jax.random.fold_in(key, 1),
              B=2, C_in=8, C_out=8, T=1000, K=3, dilation=4, padding=4, t_tile=256)

    print("KERNEL_OK")
</pallas_src>

<mosaic_0001>
module attributes {stable_mosaic.version = 11 : i64} {
  func.func @_conv1d_kernel(%arg0: i32, %arg1: i32, %arg2: memref<1x16x512xf32, #tpu.memory_space<vmem>>, %arg3: memref<1x1x16x128xf32, #tpu.memory_space<vmem>>, %arg4: memref<32x48xf32, #tpu.memory_space<vmem>>, %arg5: memref<32x1xf32, #tpu.memory_space<vmem>>, %arg6: memref<1x32x512xf32, #tpu.memory_space<vmem>>, %arg7: memref<48x512xf32, #tpu.memory_space<vmem>>) attributes {dimension_semantics = [#tpu.dimension_semantics<parallel>, #tpu.dimension_semantics<parallel>], iteration_bounds = array<i64: 2, 1>, scalar_prefetch = 0 : i64, scratch_operands = 1 : i64, tpu.core_type = #tpu.core_type<tc>, window_params = [{transform_indices = @transform_0, window_bounds = array<i64: 1, 16, 512>}, {transform_indices = @transform_1, window_bounds = array<i64: 1, 1, 16, 128>}, {pipeline_mode = #tpu.pipeline_mode<synchronous>, transform_indices = @transform_2, window_bounds = array<i64: 32, 48>}, {pipeline_mode = #tpu.pipeline_mode<synchronous>, transform_indices = @transform_3, window_bounds = array<i64: 32, 1>}, {transform_indices = @transform_4, window_bounds = array<i64: 1, 32, 512>}]} {
    %c0 = arith.constant 0 : index
    %c0_0 = arith.constant 0 : index
    %c0_1 = arith.constant 0 : index
    %0 = vector.load %arg2[%c0, %c0_0, %c0_1] : memref<1x16x512xf32, #tpu.memory_space<vmem>>, vector<1x16x512xf32>
    %1 = vector.shape_cast %0 : vector<1x16x512xf32> to vector<16x512xf32>
    %c0_2 = arith.constant 0 : index
    %c0_3 = arith.constant 0 : index
    %2 = vector.load %arg7[%c0_2, %c0_3] : memref<48x512xf32, #tpu.memory_space<vmem>>, vector<16x512xf32>
    tpu.vector_store %arg7[%c0_2, %c0_3], %1 {strides = array<i32>} : memref<48x512xf32, #tpu.memory_space<vmem>>, vector<16x512xf32>,
    %c0_4 = arith.constant 0 : index
    %c0_5 = arith.constant 0 : index
    %c2 = arith.constant 2 : index
    %3 = vector.load %arg2[%c0_4, %c0_5, %c2] : memref<1x16x512xf32, #tpu.memory_space<vmem>>, vector<1x16x510xf32>
    %4 = vector.shape_cast %3 : vector<1x16x510xf32> to vector<16x510xf32>
    %c16 = arith.constant 16 : index
    %c0_6 = arith.constant 0 : index
    %5 = vector.load %arg7[%c16, %c0_6] : memref<48x512xf32, #tpu.memory_space<vmem>>, vector<16x510xf32>
    tpu.vector_store %arg7[%c16, %c0_6], %4 {strides = array<i32>} : memref<48x512xf32, #tpu.memory_space<vmem>>, vector<16x510xf32>,
    %c0_7 = arith.constant 0 : index
    %c0_8 = arith.constant 0 : index
    %c0_9 = arith.constant 0 : index
    %c0_10 = arith.constant 0 : index
    %6 = vector.load %arg3[%c0_7, %c0_8, %c0_9, %c0_10] : memref<1x1x16x128xf32, #tpu.memory_space<vmem>>, vector<1x1x16x2xf32>
    %7 = vector.shape_cast %6 : vector<1x1x16x2xf32> to vector<16x2xf32>
    %c16_11 = arith.constant 16 : index
    %c510 = arith.constant 510 : index
    %8 = vector.load %arg7[%c16_11, %c510] : memref<48x512xf32, #tpu.memory_space<vmem>>, vector<16x2xf32>
    tpu.vector_store %arg7[%c16_11, %c510], %7 {strides = array<i32>} : memref<48x512xf32, #tpu.memory_space<vmem>>, vector<16x2xf32>,
    %c0_12 = arith.constant 0 : index
    %c0_13 = arith.constant 0 : index
    %c4 = arith.constant 4 : index
    %9 = vector.load %arg2[%c0_12, %c0_13, %c4] : memref<1x16x512xf32, #tpu.memory_space<vmem>>, vector<1x16x508xf32>
    %10 = vector.shape_cast %9 : vector<1x16x508xf32> to vector<16x508xf32>
    %c32 = arith.constant 32 : index
    %c0_14 = arith.constant 0 : index
    %11 = vector.load %arg7[%c32, %c0_14] : memref<48x512xf32, #tpu.memory_space<vmem>>, vector<16x508xf32>
    tpu.vector_store %arg7[%c32, %c0_14], %10 {strides = array<i32>} : memref<48x512xf32, #tpu.memory_space<vmem>>, vector<16x508xf32>,
    %c0_15 = arith.constant 0 : index
    %c0_16 = arith.constant 0 : index
    %c0_17 = arith.constant 0 : index
    %c0_18 = arith.constant 0 : index
    %12 = vector.load %arg3[%c0_15, %c0_16, %c0_17, %c0_18] : memref<1x1x16x128xf32, #tpu.memory_space<vmem>>, vector<1x1x16x4xf32>
    %13 = vector.shape_cast %12 : vector<1x1x16x4xf32> to vector<16x4xf32>
    %c32_19 = arith.constant 32 : index
    %c508 = arith.constant 508 : index
    %14 = vector.load %arg7[%c32_19, %c508] : memref<48x512xf32, #tpu.memory_space<vmem>>, vector<16x4xf32>
    tpu.vector_store %arg7[%c32_19, %c508], %13 {strides = array<i32>} : memref<48x512xf32, #tpu.memory_space<vmem>>, vector<16x4xf32>,
    %c0_20 = arith.constant 0 : index
    %c0_21 = arith.constant 0 : index
    %15 = vector.load %arg4[%c0_20, %c0_21] : memref<32x48xf32, #tpu.memory_space<vmem>>, vector<32x48xf32>
    %c0_22 = arith.constant 0 : index
    %c0_23 = arith.constant 0 : index
    %16 = vector.load %arg7[%c0_22, %c0_23] : memref<48x512xf32, #tpu.memory_space<vmem>>, vector<48x512xf32>
    %cst = arith.constant dense<0.000000e+00> : vector<32x512xf32>
    %17 = tpu.matmul %15, %16, %cst {dimension_numbers = #tpu.dot_dimension_numbers<[1], [0], [0], [1], [0, 0, 1, 1], [], []>} : vector<32x48xf32>, vector<48x512xf32>, vector<32x512xf32> -> vector<32x512xf32>
    %c0_24 = arith.constant 0 : index
    %c0_25 = arith.constant 0 : index
    %18 = vector.load %arg5[%c0_24, %c0_25] : memref<32x1xf32, #tpu.memory_space<vmem>>, vector<32x1xf32>
    %19 = vector.broadcast %18 : vector<32x1xf32> to vector<32x512xf32>
    %20 = arith.addf %17, %19 : vector<32x512xf32>
    %c0_26 = arith.constant 0 : index
    %c0_27 = arith.constant 0 : index
    %c0_28 = arith.constant 0 : index
    %21 = vector.load %arg6[%c0_26, %c0_27, %c0_28] : memref<1x32x512xf32, #tpu.memory_space<vmem>>, vector<1x32x512xf32>
    %22 = vector.shape_cast %21 : vector<1x32x512xf32> to vector<32x512xf32>
    %23 = vector.shape_cast %20 : vector<32x512xf32> to vector<1x32x512xf32>
    tpu.vector_store %arg6[%c0_26, %c0_27, %c0_28], %23 {strides = array<i32>} : memref<1x32x512xf32, #tpu.memory_space<vmem>>, vector<1x32x512xf32>,
    return
  }
  func.func @transform_0(%arg0: i32, %arg1: i32) -> (i32, i32, i32) {
    %c0_i32 = arith.constant 0 : i32
    %c0_i32_0 = arith.constant 0 : i32
    return %arg0, %c0_i32, %arg1 : i32, i32, i32
  }
  func.func @transform_1(%arg0: i32, %arg1: i32) -> (i32, i32, i32, i32) {
    %c0_i32 = arith.constant 0 : i32
    %c0_i32_0 = arith.constant 0 : i32
    %c0_i32_1 = arith.constant 0 : i32
    return %arg0, %arg1, %c0_i32, %c0_i32_0 : i32, i32, i32, i32
  }
  func.func @transform_2(%arg0: i32, %arg1: i32) -> (i32, i32) {
    %c0_i32 = arith.constant 0 : i32
    %c0_i32_0 = arith.constant 0 : i32
    %c0_i32_1 = arith.constant 0 : i32
    return %c0_i32, %c0_i32_0 : i32, i32
  }
  func.func @transform_3(%arg0: i32, %arg1: i32) -> (i32, i32) {
    %c0_i32 = arith.constant 0 : i32
    %c0_i32_0 = arith.constant 0 : i32
    %c0_i32_1 = arith.constant 0 : i32
    return %c0_i32, %c0_i32_0 : i32, i32
  }
  func.func @transform_4(%arg0: i32, %arg1: i32) -> (i32, i32, i32) {
    %c0_i32 = arith.constant 0 : i32
    %c0_i32_0 = arith.constant 0 : i32
    return %arg0, %c0_i32, %arg1 : i32, i32, i32
  }
}

</mosaic_0001>

<llo_original>
// kernel: tpu_custom_call.1
$region0: #{tpu_custom_call.1}
  #allocation0 [shape = 'u32[]', space=smem, size = 0x4, offset = 0x4, fixed_abs, tag = 'smem constant byte address 0x4 - core index']
  #allocation1 [shape = 'u32[144,128]{1,0:T(1,128)}', space=vmem, size = 0x12000, scoped, tag = 'internal scratch']
  #allocation2 [shape = 'f32[48,512]{1,0:T(8,128)}', space=vmem, size = 0x18000, scoped, tag = 'scratch operand']
  %s0 = inlined_call_operand.hbm [shape: f32[2,16,640], index: 0, kind: input, shape index: {}]
  %s1 = inlined_call_operand.vmem [shape: f32[2,1,16,128], index: 1, kind: input, shape index: {}]
  %s2 = inlined_call_operand.hbm [shape: f32[32,48], index: 2, kind: input, shape index: {}]
  %s3 = inlined_call_operand.vmem [shape: f32[32,1], index: 3, kind: input, shape index: {}]
  %s4 = inlined_call_operand.hbm [shape: f32[2,32,512], index: 4, kind: output, shape index: {}]
  %s5 = sld [smem:[#allocation0]]
  $region57: #{tpu_custom_call.1} parent=0
    _
  %s7 = ssub.s32 1, %s5
  %s8 = scalar_select 0, %s7, %s5
  $region1: #{tpu_custom_call.1} parent=0
    #allocation3 [shape = 'u8[65536]{0}', space=vmem, size = 0x10000, scoped, tag = 'input window, operand 0']
    #allocation4 [shape = 's32[2]{0}', space=sflag, size = 0x8, scoped, tag = 'scoped memory for tpu_custom_call.1']
    #allocation5 [shape = 's32[2]{0}', space=sflag, size = 0x8, scoped, tag = 'scoped memory for tpu_custom_call.1']
    #allocation6 [shape = 'u8[16384]{0}', space=vmem, size = 0x4000, scoped, tag = 'input window, operand 2, single buffered']
    #allocation7 [shape = 's32[1]{0}', space=sflag, size = 0x4, scoped, tag = 'scoped memory for tpu_custom_call.1']
    #allocation8 [shape = 'u8[131072]{0}', space=vmem, size = 0x20000, scoped, tag = 'output window, operand 0']
    %9 = vsyncpa [#allocation4], 0
    %s10 = scalar_lea.sflag [#allocation4], 1
    %11 = vsyncpa %s10, 0
    %12 = vsyncpa [#allocation7], 0
    %13 = vsyncpa [#allocation5], 0
    %s14 = scalar_lea.sflag [#allocation5], 1
    %15 = vsyncpa %s14, 0
    loop: start=0, step=1, limit=4
    $region2: #{tpu_custom_call.1} parent=1 // loop_pre_header
      _
    $region3: #{tpu_custom_call.1} parent=1 // loop_header
      %s17 = sphi 0, %s21
      %p18 = scmp.ge.s32.totalorder %s17, 4
      %s24 = sphi 0, %s36
      %s25 = sphi 0, %s32
      %s26 = sphi 0, %s24
      %s27 = sphi 0, %s25
      %s28 = sphi 0, %s26
      %s29 = sphi 0, %s27
      %s41 = sphi 0, %s43
      %s44 = sphi 0, %s41
      %s45 = sphi 0, %s44
      %s61 = sphi 0, %s45
      %s69 = sphi 0, %s71
      %s72 = sphi 0, %s69
      %s73 = sphi 0, %s72
      %s89 = sphi 0, %s73
      %s93 = sphi 0, %s93
      %s95 = sphi 0, %s93
      %s96 = sphi 0, %s95
      %s110 = sphi 0, %s96
      %s114 = sphi 0, %s114
      %s116 = sphi 0, %s114
      %s117 = sphi 0, %s116
      %s131 = sphi 0, %s117
      %s139 = sphi 0, %s141
      %s142 = sphi 0, %s139
      %s143 = sphi 0, %s142
      %s159 = sphi 0, %s143
    $region4: #{tpu_custom_call.1} parent=1 // loop_header_branch
      %20 = sbr.rel (%p18) target = $region8
    $region5: #{tpu_custom_call.1} parent=1 // loop_body
      %s22 = ssub.s32 %s17, 1
      %s23 = ssub.s32 %s17, 2
      %s30 = sadd.s32 1, %s25
      %p31 = scmp.ge.s32.totalorder %s30, 1
      %s32 = scalar_select %p31, 0, %s30
      %s33 = sadd.s32 1, %s24
      %s34 = scalar_select %p31, %s33, %s24
      %p35 = scmp.ge.s32.totalorder %s34, 2
      %s36 = scalar_select %p35, 0, %s34
      %s37 = ssub.s32 %s24, %s36
      %s38 = ssub.s32 %s25, %s32
      %s39 = sor.u32 %s37, %s38
      %p40 = scmp.eq.s32.totalorder %s39, 0
      %s42 = sadd.s32 %s41, 1
      %s43 = scalar_select %p40, %s41, %s42
      %p46 = pneg %p40
      %p47 = scmp.eq.s32.totalorder %s17, 1
      %p48 = por %p46, %p47
      %p49 = scmp.ne.s32.totalorder %s41, %s44
      %p50 = scmp.eq.s32.totalorder %s17, 0
      %p51 = por %p49, %p50
      %p52 = scmp.ne.s32.totalorder %s41, %s44
      %p53 = scmp.eq.s32.totalorder %s22, 1
      %p54 = por %p52, %p53
      %p55 = scmp.ne.s32.totalorder %s44, %s45
      %p56 = scmp.eq.s32.totalorder %s22, 0
      %p57 = por %p55, %p56
      %p58 = scmp.ne.s32.totalorder %s44, %s45
      %p59 = scmp.eq.s32.totalorder %s23, 1
      %p60 = por %p58, %p59
      %p62 = scmp.ne.s32.totalorder %s45, %s61
      %p63 = scmp.eq.s32.totalorder %s23, 0
      %p64 = por %p62, %p63
      %s65 = ssub.s32 %s24, %s36
      %s66 = ssub.s32 %s25, %s32
      %s67 = sor.u32 %s65, %s66
      %p68 = scmp.eq.s32.totalorder %s67, 0
      %s70 = sadd.s32 %s69, 1
      %s71 = scalar_select %p68, %s69, %s70
      %p74 = pneg %p68
      %p75 = scmp.eq.s32.totalorder %s17, 1
      %p76 = por %p74, %p75
      %p77 = scmp.ne.s32.totalorder %s69, %s72
      %p78 = scmp.eq.s32.totalorder %s17, 0
      %p79 = por %p77, %p78
      %p80 = scmp.ne.s32.totalorder %s69, %s72
      %p81 = scmp.eq.s32.totalorder %s22, 1
      %p82 = por %p80, %p81
      %p83 = scmp.ne.s32.totalorder %s72, %s73
      %p84 = scmp.eq.s32.totalorder %s22, 0
      %p85 = por %p83, %p84
      %p86 = scmp.ne.s32.totalorder %s72, %s73
      %p87 = scmp.eq.s32.totalorder %s23, 1
      %p88 = por %p86, %p87
      %p90 = scmp.ne.s32.totalorder %s73, %s89
      %p91 = scmp.eq.s32.totalorder %s23, 0
      %p92 = por %p90, %p91
      %s94 = sadd.s32 %s93, 1
      %p97 = scmp.eq.s32.totalorder %s17, 1
      %p98 = scmp.ne.s32.totalorder %s93, %s95
      %p99 = scmp.eq.s32.totalorder %s17, 0
      %p100 = por %p98, %p99
      %p101 = scmp.ne.s32.totalorder %s93, %s95
      %p102 = scmp.eq.s32.totalorder %s22, 1
      %p103 = por %p101, %p102
      %p104 = scmp.ne.s32.totalorder %s95, %s96
      %p105 = scmp.eq.s32.totalorder %s22, 0
      %p106 = por %p104, %p105
      %p107 = scmp.ne.s32.totalorder %s95, %s96
      %p108 = scmp.eq.s32.totalorder %s23, 1
      %p109 = por %p107, %p108
      %p111 = scmp.ne.s32.totalorder %s96, %s110
      %p112 = scmp.eq.s32.totalorder %s23, 0
      %p113 = por %p111, %p112
      %s115 = sadd.s32 %s114, 1
      %p118 = scmp.eq.s32.totalorder %s17, 1
      %p119 = scmp.ne.s32.totalorder %s114, %s116
      %p120 = scmp.eq.s32.totalorder %s17, 0
      %p121 = por %p119, %p120
      %p122 = scmp.ne.s32.totalorder %s114, %s116
      %p123 = scmp.eq.s32.totalorder %s22, 1
      %p124 = por %p122, %p123
      %p125 = scmp.ne.s32.totalorder %s116, %s117
      %p126 = scmp.eq.s32.totalorder %s22, 0
      %p127 = por %p125, %p126
      %p128 = scmp.ne.s32.totalorder %s116, %s117
      %p129 = scmp.eq.s32.totalorder %s23, 1
      %p130 = por %p128, %p129
      %p132 = scmp.ne.s32.totalorder %s117, %s131
      %p133 = scmp.eq.s32.totalorder %s23, 0
      %p134 = por %p132, %p133
      %s135 = ssub.s32 %s24, %s36
      %s136 = ssub.s32 %s25, %s32
      %s137 = sor.u32 %s135, %s136
      %p138 = scmp.eq.s32.totalorder %s137, 0
      %s140 = sadd.s32 %s139, 1
      %s141 = scalar_select %p138, %s139, %s140
      %p144 = pneg %p138
      %p145 = scmp.eq.s32.totalorder %s17, 1
      %p146 = por %p144, %p145
      %p147 = scmp.ne.s32.totalorder %s139, %s142
      %p148 = scmp.eq.s32.totalorder %s17, 0
      %p149 = por %p147, %p148
      %p150 = scmp.ne.s32.totalorder %s139, %s142
      %p151 = scmp.eq.s32.totalorder %s22, 1
      %p152 = por %p150, %p151
      %p153 = scmp.ne.s32.totalorder %s142, %s143
      %p154 = scmp.eq.s32.totalorder %s22, 0
      %p155 = por %p153, %p154
      %p156 = scmp.ne.s32.totalorder %s142, %s143
      %p157 = scmp.eq.s32.totalorder %s23, 1
      %p158 = por %p156, %p157
      %p160 = scmp.ne.s32.totalorder %s143, %s159
      %p161 = scmp.eq.s32.totalorder %s23, 0
      %p162 = por %p160, %p161
      %p163 = scmp.le.s32.totalorder 1, %s17
      %p164 = scmp.lt.s32.totalorder %s17, 3
      %p165 = pnand %p163, %p164
      %p166 = pneg %p165
      // Predicated region
      $region9: #{tpu_custom_call.1} parent=5 // pred_check
        _
      $region10: #{tpu_custom_call.1} parent=5 // pred_check_branch
        %168 = sbr.rel (%p165) target = $region12
      $region11: #{tpu_custom_call.1} parent=5 // pred_region
        %s169 = ssub.s32 %s17, 1
        // Predicated region
        $region13: #{tpu_custom_call.1} parent=11 // pred_check
          %p170 = pneg %p106
        $region14: #{tpu_custom_call.1} parent=11 // pred_check_branch
          %172 = sbr.rel (%p170) target = $region16
        $region15: #{tpu_custom_call.1} parent=11 // pred_region
          %s174 = ssub.s32 512, 512
          %175 = vsyncadd [#allocation7], %s174
          %s176 = sshll.u32 [#allocation6], 4
          %s177 = int_to_ptr.vmem [resolvable:$true] %s176
          %182 = dma.hbm_to_vmem [thread:$0]  %s2, 512, %s177, [#allocation7], 128, 128, 8
        $region16: #{tpu_custom_call.1} parent=11 // pred_fallthru
          _
        // Predicated region
        $region17: #{tpu_custom_call.1} parent=11 // pred_check
          %p183 = pneg %p127
        $region18: #{tpu_custom_call.1} parent=11 // pred_check_branch
          %185 = sbr.rel (%p183) target = $region20
        $region19: #{tpu_custom_call.1} parent=11 // pred_region
          _
        $region20: #{tpu_custom_call.1} parent=11 // pred_fallthru
          _
      $region12: #{tpu_custom_call.1} parent=5 // pred_fallthru
        _
      %p186 = scmp.lt.s32.totalorder %s17, 2
      // Predicated region
      $region21: #{tpu_custom_call.1} parent=5 // pred_check
        %p187 = pneg %p186
      $region22: #{tpu_custom_call.1} parent=5 // pred_check_branch
        %189 = sbr.rel (%p187) target = $region24
      $region23: #{tpu_custom_call.1} parent=5 // pred_region
        // Predicated region
        $region25: #{tpu_custom_call.1} parent=23 // pred_check
          %p190 = pneg %p51
        $region26: #{tpu_custom_call.1} parent=23 // pred_check_branch
          %192 = sbr.rel (%p190) target = $region28
        $region27: #{tpu_custom_call.1} parent=23 // pred_region
          %s193 = sand.u32 %s41, 1
          %s194 = scalar_lea.sflag [#allocation4], %s193
          %s195 = sand.u32 %s41, 1
          %s196 = smul.addr %s195, 64
          %s197 = scalar_lea.vmem [#allocation3], %s196
          %s198 = smul.u32 4, %s25
          %s199 = ssub.s32 5, %s198
          %p200 = scmp.lt.s32.totalorder %s199, 4
          %s201 = scalar_select %p200, %s199, 4
          %s202 = smul.u32 256, %s201
          %s204 = ssub.s32 1024, %s202
          %205 = vsyncadd %s194, %s204
          %p206 = scmp.ne.s32.totalorder 0, %s202
          %s207 = smul.addr %s24, 10
          %s208 = sadd.s32 %s198, %s207
          %s209 = smul.addr %s208, 128
          %s210 = scalar_lea.hbm %s0, %s209
          %s211 = smul.u32 %s201, 8
          %s212 = smul.u32 %s211, 2
          %s213 = sshll.u32 %s197, 4
          %s214 = int_to_ptr.vmem [resolvable:$true] %s213
          %s215 = sshll.u32 %s212, 4
          %219 = dma.hbm_to_vmem [thread:$0]  (%p206), %s210, %s215, %s214, %s194, 640, 512, %s211
        $region28: #{tpu_custom_call.1} parent=23 // pred_fallthru
          _
        // Predicated region
        $region29: #{tpu_custom_call.1} parent=23 // pred_check
          %p220 = pneg %p79
        $region30: #{tpu_custom_call.1} parent=23 // pred_check_branch
          %222 = sbr.rel (%p220) target = $region32
        $region31: #{tpu_custom_call.1} parent=23 // pred_region
          %p223 = scmp.lt.s32.totalorder %s24, 1
          %s224 = scalar_select %p223, %s24, 1
          %p225 = scmp.lt.s32.totalorder %s25, 0
          %s226 = scalar_select %p225, %s25, 0
          %s227 = smul.addr %s226, 2
          %s228 = smul.addr %s224, 2
          %s229 = sadd.s32 %s227, %s228
          %s230 = smul.addr %s229, 8
          %s231 = scalar_lea.vmem %s1, %s230
        $region32: #{tpu_custom_call.1} parent=23 // pred_fallthru
          _
      $region24: #{tpu_custom_call.1} parent=5 // pred_fallthru
        _
      %p232 = scmp.le.s32.totalorder 1, %s17
      %p233 = scmp.lt.s32.totalorder %s17, 3
      %p234 = pnand %p232, %p233
      %p235 = pneg %p234
      // Predicated region
      $region33: #{tpu_custom_call.1} parent=5 // pred_check
        _
      $region34: #{tpu_custom_call.1} parent=5 // pred_check_branch
        %237 = sbr.rel (%p234) target = $region36
      $region35: #{tpu_custom_call.1} parent=5 // pred_region
        %s238 = ssub.s32 %s17, 1
        %s239 = sand.u32 %s44, 1
        %s240 = scalar_lea.sflag [#allocation4], %s239
        %s241 = sand.u32 %s44, 1
        %s242 = smul.addr %s241, 64
        %s243 = scalar_lea.vmem [#allocation3], %s242
        // Predicated region
        $region37: #{tpu_custom_call.1} parent=35 // pred_check
          %p244 = pneg %p57
        $region38: #{tpu_custom_call.1} parent=35 // pred_check_branch
          %246 = sbr.rel (%p244) target = $region40
        $region39: #{tpu_custom_call.1} parent=35 // pred_region
          %247 = dma.done %s240, 1024
        $region40: #{tpu_custom_call.1} parent=35 // pred_fallthru
          _
        // Predicated region
        $region41: #{tpu_custom_call.1} parent=35 // pred_check
          %p248 = pneg %p106
        $region42: #{tpu_custom_call.1} parent=35 // pred_check_branch
          %250 = sbr.rel (%p248) target = $region44
        $region43: #{tpu_custom_call.1} parent=35 // pred_region
          %251 = dma.done [#allocation7], 512
        $region44: #{tpu_custom_call.1} parent=35 // pred_fallthru
          _
        %s252 = sand.u32 %s44, 1
        %s253 = scalar_lea.sflag [#allocation4], %s252
        %s254 = sand.u32 %s44, 1
        %s255 = smul.addr %s254, 64
        %s256 = scalar_lea.vmem [#allocation3], %s255
        %p257 = pneg %p57
        %p258 = pneg %p54
        %p259 = scmp.lt.s32.totalorder %s26, 1
        %s260 = scalar_select %p259, %s26, 1
        %p261 = scmp.lt.s32.totalorder %s27, 0
        %s262 = scalar_select %p261, %s27, 0
        %s263 = smul.addr %s262, 2
        %s264 = smul.addr %s260, 2
        %s265 = sadd.s32 %s263, %s264
        %s266 = smul.addr %s265, 8
        %s267 = scalar_lea.vmem %s1, %s266
        %p268 = pneg %p85
        %p269 = pneg %p82
        %p270 = pneg %p106
        %p271 = pneg %p103
        %p272 = pneg %p127
        %p273 = pneg %p124
        %p274 = pneg %p155
        %p275 = pneg %p152
        %s276 = sand.u32 %s142, 1
        %s277 = scalar_lea.sflag [#allocation5], %s276
        %s278 = sand.u32 %s142, 1
        %s279 = smul.addr %s278, 128
        %s280 = scalar_lea.vmem [#allocation8], %s279
        %s281 = smul.u32 4, %s27
        %s282 = ssub.s32 5, %s281
        %p283 = scmp.lt.s32.totalorder %s282, 4
        %s284 = scalar_select %p283, %s282, 4
        %s285 = smul.u32 256, %s284
        %p286 = scmp.lt.s32.totalorder %s26, 1
        %s287 = scalar_select %p286, %s26, 1
        %p288 = scmp.lt.s32.totalorder %s27, 0
        %s289 = scalar_select %p288, %s27, 0
        %s290 = smul.addr %s289, 2
        %s291 = smul.addr %s287, 2
        %s292 = sadd.s32 %s290, %s291
        %s293 = smul.addr %s292, 8
        %s294 = scalar_lea.vmem %s1, %s293
        %s295 = smul.u32 4, %s27
        %v296 = vld [vmem:[%s243] sm:$0xff]
        %v297 = vld [vmem:[%s243 + $0x8] sm:$0xff]
        %v298 = vld [vmem:[%s243 + $0x10] sm:$0xff]
        %v299 = vld [vmem:[%s243 + $0x18] sm:$0xff]
        %v300 = vld [vmem:[%s243 + $0x20] sm:$0xff]
        %v301 = vld [vmem:[%s243 + $0x28] sm:$0xff]
        %v302 = vld [vmem:[%s243 + $0x30] sm:$0xff]
        %v303 = vld [vmem:[%s243 + $0x38] sm:$0xff]
        %304 = vst [vmem:[#allocation2] sm:$0xff] %v296
        %305 = vst [vmem:[#allocation2 + $0x8] sm:$0xff] %v297
        %306 = vst [vmem:[#allocation2 + $0x10] sm:$0xff] %v298
        %307 = vst [vmem:[#allocation2 + $0x18] sm:$0xff] %v299
        %308 = vst [vmem:[#allocation2 + $0x20] sm:$0xff] %v300
        %309 = vst [vmem:[#allocation2 + $0x28] sm:$0xff] %v301
        %310 = vst [vmem:[#allocation2 + $0x30] sm:$0xff] %v302
        %311 = vst [vmem:[#allocation2 + $0x38] sm:$0xff] %v303
        %v312 = vld [vmem:[%s243] sm:$0xff]
        %v313 = vld [vmem:[%s243 + $0x8] sm:$0xff]
        %v314 = vld [vmem:[%s243 + $0x10] sm:$0xff]
        %v315 = vld [vmem:[%s243 + $0x18] sm:$0xff]
        %v316 = vld [vmem:[%s243 + $0x20] sm:$0xff]
        %v317 = vld [vmem:[%s243 + $0x28] sm:$0xff]
        %v318 = vld [vmem:[%s243 + $0x30] sm:$0xff]
        %v319 = vld [vmem:[%s243 + $0x38] sm:$0xff]
        %328 = vrot.lane.b32.xlu0 %v312, 126
        %v329 = vpop.permute.xlu0 %328
        %330 = vrot.lane.b32.xlu0 %v313, 126
        %v331 = vpop.permute.xlu0 %330
        %332 = vrot.lane.b32.xlu0 %v314, 126
        %v333 = vpop.permute.xlu0 %332
        %334 = vrot.lane.b32.xlu0 %v315, 126
        %v335 = vpop.permute.xlu0 %334
        %336 = vrot.lane.b32.xlu0 %v316, 126
        %v337 = vpop.permute.xlu0 %336
        %338 = vrot.lane.b32.xlu0 %v317, 126
        %v339 = vpop.permute.xlu0 %338
        %340 = vrot.lane.b32.xlu0 %v318, 126
        %v341 = vpop.permute.xlu0 %340
        %342 = vrot.lane.b32.xlu0 %v319, 126
        %v343 = vpop.permute.xlu0 %342
        %vm344 = vcmask 1031168
        %v345 = vsel %vm344, %v329, %v331
        %v346 = vsel %vm344, %v331, %v333
        %v347 = vsel %vm344, %v333, %v335
        %v348 = vsel %vm344, %v337, %v339
        %v349 = vsel %vm344, %v339, %v341
        %v350 = vsel %vm344, %v341, %v343
        %359 = vst [vmem:[#allocation2 + $0x40] sm:$0xff] %v345
        %360 = vst [vmem:[#allocation2 + $0x48] sm:$0xff] %v346
        %361 = vst [vmem:[#allocation2 + $0x50] sm:$0xff] %v347
        %362 = vst.msk [vmem:[#allocation2 + $0x58] sm:$0xff] %vm344, %v335
        %363 = vst [vmem:[#allocation2 + $0x60] sm:$0xff] %v348
        %364 = vst [vmem:[#allocation2 + $0x68] sm:$0xff] %v349
        %365 = vst [vmem:[#allocation2 + $0x70] sm:$0xff] %v350
        %366 = vst.msk [vmem:[#allocation2 + $0x78] sm:$0xff] %vm344, %v343
        %v367 = vld [vmem:[%s294] sm:$0xff]
        %v368 = vld [vmem:[%s294 + $0x8] sm:$0xff]
        %371 = vrot.lane.b32.xlu0 %v367, 126
        %v372 = vpop.permute.xlu0 %371
        %373 = vrot.lane.b32.xlu0 %v368, 126
        %v374 = vpop.permute.xlu0 %373
        %vm377 = vcmask 1048560
        %378 = vst.msk [vmem:[#allocation2 + $0x58] sm:$0xff] %vm377, %v372
        %379 = vst.msk [vmem:[#allocation2 + $0x78] sm:$0xff] %vm377, %v374
        %v380 = vld [vmem:[%s243] sm:$0xff]
        %v381 = vld [vmem:[%s243 + $0x8] sm:$0xff]
        %v382 = vld [vmem:[%s243 + $0x10] sm:$0xff]
        %v383 = vld [vmem:[%s243 + $0x18] sm:$0xff]
        %v384 = vld [vmem:[%s243 + $0x20] sm:$0xff]
        %v385 = vld [vmem:[%s243 + $0x28] sm:$0xff]
        %v386 = vld [vmem:[%s243 + $0x30] sm:$0xff]
        %v387 = vld [vmem:[%s243 + $0x38] sm:$0xff]
        %396 = vrot.lane.b32.xlu0 %v380, 124
        %v397 = vpop.permute.xlu0 %396
        %398 = vrot.lane.b32.xlu0 %v381, 124
        %v399 = vpop.permute.xlu0 %398
        %400 = vrot.lane.b32.xlu0 %v382, 124
        %v401 = vpop.permute.xlu0 %400
        %402 = vrot.lane.b32.xlu0 %v383, 124
        %v403 = vpop.permute.xlu0 %402
        %404 = vrot.lane.b32.xlu0 %v384, 124
        %v405 = vpop.permute.xlu0 %404
        %406 = vrot.lane.b32.xlu0 %v385, 124
        %v407 = vpop.permute.xlu0 %406
        %408 = vrot.lane.b32.xlu0 %v386, 124
        %v409 = vpop.permute.xlu0 %408
        %410 = vrot.lane.b32.xlu0 %v387, 124
        %v411 = vpop.permute.xlu0 %410
        %vm412 = vcmask 1014784
        %v413 = vsel %vm412, %v397, %v399
        %v414 = vsel %vm412, %v399, %v401
        %v415 = vsel %vm412, %v401, %v403
        %v416 = vsel %vm412, %v405, %v407
        %v417 = vsel %vm412, %v407, %v409
        %v418 = vsel %vm412, %v409, %v411
        %427 = vst [vmem:[#allocation2 + $0x80] sm:$0xff] %v413
        %428 = vst [vmem:[#allocation2 + $0x88] sm:$0xff] %v414
        %429 = vst [vmem:[#allocation2 + $0x90] sm:$0xff] %v415
        %430 = vst.msk [vmem:[#allocation2 + $0x98] sm:$0xff] %vm412, %v403
        %431 = vst [vmem:[#allocation2 + $0xa0] sm:$0xff] %v416
        %432 = vst [vmem:[#allocation2 + $0xa8] sm:$0xff] %v417
        %433 = vst [vmem:[#allocation2 + $0xb0] sm:$0xff] %v418
        %434 = vst.msk [vmem:[#allocation2 + $0xb8] sm:$0xff] %vm412, %v411
        %v435 = vld [vmem:[%s294] sm:$0xff]
        %v436 = vld [vmem:[%s294 + $0x8] sm:$0xff]
        %439 = vrot.lane.b32.xlu0 %v435, 124
        %v440 = vpop.permute.xlu0 %439
        %441 = vrot.lane.b32.xlu0 %v436, 124
        %v442 = vpop.permute.xlu0 %441
        %vm445 = vcmask 1048544
        %446 = vst.msk [vmem:[#allocation2 + $0x98] sm:$0xff] %vm445, %v440
        %447 = vst.msk [vmem:[#allocation2 + $0xb8] sm:$0xff] %vm445, %v442
        %v448 = vld [vmem:[#allocation6] sm:$0xff]
        %v449 = vld [vmem:[#allocation6 + $0x8] sm:$0xff]
        %v450 = vld [vmem:[#allocation6 + $0x10] sm:$0xff]
        %v451 = vld [vmem:[#allocation6 + $0x18] sm:$0xff]
        %v452 = vld [vmem:[#allocation2] sm:$0xff]
        %v453 = vld [vmem:[#allocation2 + $0x8] sm:$0xff]
        %v454 = vld [vmem:[#allocation2 + $0x10] sm:$0xff]
        %v455 = vld [vmem:[#allocation2 + $0x18] sm:$0xff]
        %v456 = vld [vmem:[#allocation2 + $0x20] sm:$0xff]
        %v457 = vld [vmem:[#allocation2 + $0x28] sm:$0xff]
        %v458 = vld [vmem:[#allocation2 + $0x30] sm:$0xff]
        %v459 = vld [vmem:[#allocation2 + $0x38] sm:$0xff]
        %v460 = vld [vmem:[#allocation2 + $0x40] sm:$0xff]
        %v461 = vld [vmem:[#allocation2 + $0x48] sm:$0xff]
        %v462 = vld [vmem:[#allocation2 + $0x50] sm:$0xff]
        %v463 = vld [vmem:[#allocation2 + $0x58] sm:$0xff]
        %v464 = vld [vmem:[#allocation2 + $0x60] sm:$0xff]
        %v465 = vld [vmem:[#allocation2 + $0x68] sm:$0xff]
        %v466 = vld [vmem:[#allocation2 + $0x70] sm:$0xff]
        %v467 = vld [vmem:[#allocation2 + $0x78] sm:$0xff]
        %v468 = vld [vmem:[#allocation2 + $0x80] sm:$0xff]
        %v469 = vld [vmem:[#allocation2 + $0x88] sm:$0xff]
        %v470 = vld [vmem:[#allocation2 + $0x90] sm:$0xff]
        %v471 = vld [vmem:[#allocation2 + $0x98] sm:$0xff]
        %v472 = vld [vmem:[#allocation2 + $0xa0] sm:$0xff]
        %v473 = vld [vmem:[#allocation2 + $0xa8] sm:$0xff]
        %v474 = vld [vmem:[#allocation2 + $0xb0] sm:$0xff]
        %v475 = vld [vmem:[#allocation2 + $0xb8] sm:$0xff]
        %v476 = vld [vmem:[%s3] sm:$0xff]
        %v477 = vld [vmem:[%s3 + $0x8] sm:$0xff]
        %v478 = vld [vmem:[%s3 + $0x10] sm:$0xff]
        %v479 = vld [vmem:[%s3 + $0x18] sm:$0xff]
        %481 = vset.pattern.permute.xlu0 0
        %482 = vperm.xlu0 %481, %v476
        %v483 = vpop.permute.xlu0 %482
        %486 = vset.pattern.permute.xlu0 0
        %487 = vperm.xlu0 %486, %v477
        %v488 = vpop.permute.xlu0 %487
        %491 = vset.pattern.permute.xlu0 0
        %492 = vperm.xlu0 %491, %v478
        %v493 = vpop.permute.xlu0 %492
        %496 = vset.pattern.permute.xlu0 0
        %497 = vperm.xlu0 %496, %v479
        %v498 = vpop.permute.xlu0 %497
        %vm500 = vcmask 392192
        %v502 = vsel %vm500, %v448, 0
        %v505 = vsel %vm500, %v449, 0
        %v508 = vsel %vm500, %v450, 0
        %v511 = vsel %vm500, %v451, 0
        %513 = vmatprep.subr.mxu0 0.0
        %514 = vmatpush1.msra.mxu0 0.0
        %515 = vmatprep.subr.mxu0 0.0
        %516 = vmatpush1.msra.mxu0 0.0
        %517 = vmatprep.subr.mxu0 0.0
        %518 = vmatpush1.msra.mxu0 0.0
        %519 = vmatprep.subr.mxu0 0.0
        %520 = vmatpush1.msra.mxu0 0.0
        %521 = vmatprep.subr.mxu0 0.0
        %522 = vmatpush1.msra.mxu0 0.0
        %523 = vmatprep.subr.mxu0 0.0
        %524 = vmatpush1.msra.mxu0 0.0
        %525 = vmatprep.subr.mxu0 0.0
        %526 = vmatpush1.msra.mxu0 0.0
        %527 = vmatprep.subr.mxu0 0.0
        %528 = vmatpush1.msra.mxu0 0.0
        %529 = vmatprep.subr.mxu0 0.0
        %530 = vmatpush1.msra.mxu0 0.0
        %531 = vmatprep.subr.mxu0 0.0
        %532 = vmatpush1.msra.mxu0 0.0
        %533 = vmatprep.subr.mxu0 %v473
        %534 = vmatpush1.msra.mxu0 %v472
        %535 = vmatprep.subr.mxu0 %v469
        %536 = vmatpush1.msra.mxu0 %v468
        %537 = vmatprep.subr.mxu0 %v465
        %538 = vmatpush1.msra.mxu0 %v464
        %539 = vmatprep.subr.mxu0 %v461
        %540 = vmatpush1.msra.mxu0 %v460
        %541 = vmatprep.subr.mxu0 %v457
        %542 = vmatpush1.msra.mxu0 %v456
        %543 = vmatprep.subr.mxu0 %v453
        %544 = vmatpush1.msra.mxu0 %v452
        %545 = vmatprep.subr.mxu0 0.0
        %546 = vmatpush2.msra.mxu0 0.0
        %547 = vmatprep.subr.mxu0 0.0
        %548 = vmatpush2.msra.mxu0 0.0
        %549 = vmatprep.subr.mxu0 0.0
        %550 = vmatpush2.msra.mxu0 0.0
        %551 = vmatprep.subr.mxu0 0.0
        %552 = vmatpush2.msra.mxu0 0.0
        %553 = vmatprep.subr.mxu0 0.0
        %554 = vmatpush2.msra.mxu0 0.0
        %555 = vmatprep.subr.mxu0 0.0
        %556 = vmatpush2.msra.mxu0 0.0
        %557 = vmatprep.subr.mxu0 0.0
        %558 = vmatpush2.msra.mxu0 0.0
        %559 = vmatprep.subr.mxu0 0.0
        %560 = vmatpush2.msra.mxu0 0.0
        %561 = vmatprep.subr.mxu0 0.0
        %562 = vmatpush2.msra.mxu0 0.0
        %563 = vmatprep.subr.mxu0 0.0
        %564 = vmatpush2.msra.mxu0 0.0
        %565 = vmatprep.subr.mxu0 0.0
        %566 = vmatpush2.msra.mxu0 0.0
        %567 = vmatprep.subr.mxu0 0.0
        %568 = vmatpush2.msra.mxu0 0.0
        %569 = vmatprep.subr.mxu0 0.0
        %570 = vmatpush2.msra.mxu0 0.0
        %571 = vmatprep.subr.mxu0 0.0
        %572 = vmatpush2.msra.mxu0 0.0
        %573 = vmatprep.subr.mxu0 0.0
        %574 = vmatpush2.msra.mxu0 0.0
        %575 = vmatprep.subr.mxu0 0.0
        %576 = vmatpush2.msra.mxu0 0.0
        %577 = vmatprep.mubr.f32.mxu0 0.0
        %578 = vmatmul.mubr.f32.gmra.mxu0 %v502
        %v579 = vpop.f32.mrf.mxu0
        %v580 = vadd.f32 %v483, %v579
        %v581 = vpop.f32.mrf.mxu0
        %v582 = vadd.f32 %v483, %v581
        %583 = vmatprep.mubr.f32.mxu0 0.0
        %584 = vmatmul.mubr.f32.gmra.mxu0 %v505
        %v585 = vpop.f32.mrf.mxu0
        %v586 = vadd.f32 %v488, %v585
        %v587 = vpop.f32.mrf.mxu0
        %v588 = vadd.f32 %v488, %v587
        %589 = vmatprep.mubr.f32.mxu0 0.0
        %590 = vmatmul.mubr.f32.gmra.mxu0 %v508
        %v591 = vpop.f32.mrf.mxu0
        %v592 = vadd.f32 %v493, %v591
        %v593 = vpop.f32.mrf.mxu0
        %v594 = vadd.f32 %v493, %v593
        %595 = vmatprep.mubr.f32.mxu0 0.0
        %596 = vmatmul.mubr.f32.gmra.mxu0 %v511
        %v597 = vpop.f32.mrf.mxu0
        %v598 = vadd.f32 %v498, %v597
        %v599 = vpop.f32.mrf.mxu0
        %v600 = vadd.f32 %v498, %v599
        %601 = vdwg.mxu0
        %602 = vmatprep.subr.mxu0 0.0
        %603 = vmatpush1.msra.mxu0 0.0
        %604 = vmatprep.subr.mxu0 0.0
        %605 = vmatpush1.msra.mxu0 0.0
        %606 = vmatprep.subr.mxu0 0.0
        %607 = vmatpush1.msra.mxu0 0.0
        %608 = vmatprep.subr.mxu0 0.0
        %609 = vmatpush1.msra.mxu0 0.0
        %610 = vmatprep.subr.mxu0 0.0
        %611 = vmatpush1.msra.mxu0 0.0
        %612 = vmatprep.subr.mxu0 0.0
        %613 = vmatpush1.msra.mxu0 0.0
        %614 = vmatprep.subr.mxu0 0.0
        %615 = vmatpush1.msra.mxu0 0.0
        %616 = vmatprep.subr.mxu0 0.0
        %617 = vmatpush1.msra.mxu0 0.0
        %618 = vmatprep.subr.mxu0 0.0
        %619 = vmatpush1.msra.mxu0 0.0
        %620 = vmatprep.subr.mxu0 0.0
        %621 = vmatpush1.msra.mxu0 0.0
        %622 = vmatprep.subr.mxu0 %v475
        %623 = vmatpush1.msra.mxu0 %v474
        %624 = vmatprep.subr.mxu0 %v471
        %625 = vmatpush1.msra.mxu0 %v470
        %626 = vmatprep.subr.mxu0 %v467
        %627 = vmatpush1.msra.mxu0 %v466
        %628 = vmatprep.subr.mxu0 %v463
        %629 = vmatpush1.msra.mxu0 %v462
        %630 = vmatprep.subr.mxu0 %v459
        %631 = vmatpush1.msra.mxu0 %v458
        %632 = vmatprep.subr.mxu0 %v455
        %633 = vmatpush1.msra.mxu0 %v454
        %634 = vmatprep.subr.mxu0 0.0
        %635 = vmatpush2.msra.mxu0 0.0
        %636 = vmatprep.subr.mxu0 0.0
        %637 = vmatpush2.msra.mxu0 0.0
        %638 = vmatprep.subr.mxu0 0.0
        %639 = vmatpush2.msra.mxu0 0.0
        %640 = vmatprep.subr.mxu0 0.0
        %641 = vmatpush2.msra.mxu0 0.0
        %642 = vmatprep.subr.mxu0 0.0
        %643 = vmatpush2.msra.mxu0 0.0
        %644 = vmatprep.subr.mxu0 0.0
        %645 = vmatpush2.msra.mxu0 0.0
        %646 = vmatprep.subr.mxu0 0.0
        %647 = vmatpush2.msra.mxu0 0.0
        %648 = vmatprep.subr.mxu0 0.0
        %649 = vmatpush2.msra.mxu0 0.0
        %650 = vmatprep.subr.mxu0 0.0
        %651 = vmatpush2.msra.mxu0 0.0
        %652 = vmatprep.subr.mxu0 0.0
        %653 = vmatpush2.msra.mxu0 0.0
        %654 = vmatprep.subr.mxu0 0.0
        %655 = vmatpush2.msra.mxu0 0.0
        %656 = vmatprep.subr.mxu0 0.0
        %657 = vmatpush2.msra.mxu0 0.0
        %658 = vmatprep.subr.mxu0 0.0
        %659 = vmatpush2.msra.mxu0 0.0
        %660 = vmatprep.subr.mxu0 0.0
        %661 = vmatpush2.msra.mxu0 0.0
        %662 = vmatprep.subr.mxu0 0.0
        %663 = vmatpush2.msra.mxu0 0.0
        %664 = vmatprep.subr.mxu0 0.0
        %665 = vmatpush2.msra.mxu0 0.0
        %666 = vmatprep.mubr.f32.mxu0 0.0
        %667 = vmatmul.mubr.f32.gmra.mxu0 %v502
        %v668 = vpop.f32.mrf.mxu0
        %v669 = vadd.f32 %v483, %v668
        %v670 = vpop.f32.mrf.mxu0
        %v671 = vadd.f32 %v483, %v670
        %672 = vmatprep.mubr.f32.mxu0 0.0
        %673 = vmatmul.mubr.f32.gmra.mxu0 %v505
        %v674 = vpop.f32.mrf.mxu0
        %v675 = vadd.f32 %v488, %v674
        %v676 = vpop.f32.mrf.mxu0
        %v677 = vadd.f32 %v488, %v676
        %678 = vmatprep.mubr.f32.mxu0 0.0
        %679 = vmatmul.mubr.f32.gmra.mxu0 %v508
        %v680 = vpop.f32.mrf.mxu0
        %v681 = vadd.f32 %v493, %v680
        %v682 = vpop.f32.mrf.mxu0
        %v683 = vadd.f32 %v493, %v682
        %684 = vmatprep.mubr.f32.mxu0 0.0
        %685 = vmatmul.mubr.f32.gmra.mxu0 %v511
        %v686 = vpop.f32.mrf.mxu0
        %v687 = vadd.f32 %v498, %v686
        %v688 = vpop.f32.mrf.mxu0
        %v689 = vadd.f32 %v498, %v688
        %690 = vdwg.mxu0
        %691 = vst [vmem:[%s280] sm:$0xff] %v580
        %692 = vst [vmem:[%s280 + $0x8] sm:$0xff] %v582
        %693 = vst [vmem:[%s280 + $0x10] sm:$0xff] %v669
        %694 = vst [vmem:[%s280 + $0x18] sm:$0xff] %v671
        %695 = vst [vmem:[%s280 + $0x20] sm:$0xff] %v586
        %696 = vst [vmem:[%s280 + $0x28] sm:$0xff] %v588
        %697 = vst [vmem:[%s280 + $0x30] sm:$0xff] %v675
        %698 = vst [vmem:[%s280 + $0x38] sm:$0xff] %v677
        %699 = vst [vmem:[%s280 + $0x40] sm:$0xff] %v592
        %700 = vst [vmem:[%s280 + $0x48] sm:$0xff] %v594
        %701 = vst [vmem:[%s280 + $0x50] sm:$0xff] %v681
        %702 = vst [vmem:[%s280 + $0x58] sm:$0xff] %v683
        %703 = vst [vmem:[%s280 + $0x60] sm:$0xff] %v598
        %704 = vst [vmem:[%s280 + $0x68] sm:$0xff] %v600
        %705 = vst [vmem:[%s280 + $0x70] sm:$0xff] %v687
        %706 = vst [vmem:[%s280 + $0x78] sm:$0xff] %v689
        %s707 = sand.u32 %s142, 1
        %s708 = scalar_lea.sflag [#allocation5], %s707
        %s709 = sand.u32 %s142, 1
        %s710 = smul.addr %s709, 128
        %s711 = scalar_lea.vmem [#allocation8], %s710
        // Predicated region
        $region45: #{tpu_custom_call.1} parent=35 // pred_check
          %p712 = pneg %p152
        $region46: #{tpu_custom_call.1} parent=35 // pred_check_branch
          %714 = sbr.rel (%p712) target = $region48
        $region47: #{tpu_custom_call.1} parent=35 // pred_region
          %s715 = smul.u32 4, %s27
          %s717 = ssub.s32 2048, 2048
          %718 = vsyncadd %s708, %s717
          %s719 = smul.addr %s26, 16
          %s720 = sadd.s32 %s715, %s719
          %s721 = smul.addr %s720, 128
          %s722 = scalar_lea.hbm %s4, %s721
          %s723 = sshll.u32 %s711, 4
          %s724 = int_to_ptr.vmem [resolvable:$true] %s723
          %729 = dma.vmem_to_hbm [thread:$0]  %s724, 2048, %s722, %s708, 512, 512, 32
        $region48: #{tpu_custom_call.1} parent=35 // pred_fallthru
          _
      $region36: #{tpu_custom_call.1} parent=5 // pred_fallthru
        _
      %p730 = scmp.le.s32.totalorder 2, %s17
      // Predicated region
      $region49: #{tpu_custom_call.1} parent=5 // pred_check
        %p731 = pneg %p730
      $region50: #{tpu_custom_call.1} parent=5 // pred_check_branch
        %733 = sbr.rel (%p731) target = $region52
      $region51: #{tpu_custom_call.1} parent=5 // pred_region
        %s734 = ssub.s32 %s17, 2
        // Predicated region
        $region53: #{tpu_custom_call.1} parent=51 // pred_check
          %p735 = pneg %p158
        $region54: #{tpu_custom_call.1} parent=51 // pred_check_branch
          %737 = sbr.rel (%p735) target = $region56
        $region55: #{tpu_custom_call.1} parent=51 // pred_region
          %s738 = sand.u32 %s143, 1
          %s739 = scalar_lea.sflag [#allocation5], %s738
          %s740 = sand.u32 %s143, 1
          %s741 = smul.addr %s740, 128
          %s742 = scalar_lea.vmem [#allocation8], %s741
          %743 = dma.done %s739, 2048
        $region56: #{tpu_custom_call.1} parent=51 // pred_fallthru
          _
      $region52: #{tpu_custom_call.1} parent=5 // pred_fallthru
        _
    $region6: #{tpu_custom_call.1} parent=1 // loop_footer
      %s21 = sadd.s32 1, %s17
    $region7: #{tpu_custom_call.1} parent=1 // loop_footer_branch
      %16 = sbr.rel target = $region3
    $region8: #{tpu_custom_call.1} parent=1 // loop_exit
      _
    %744 = vsyncpa [#allocation4], 1
    %s745 = scalar_lea.sflag [#allocation4], 1
    %746 = vsyncpa %s745, 1
    %747 = vsyncpa [#allocation7], 1
    %748 = vsyncpa [#allocation5], 1
    %s749 = scalar_lea.sflag [#allocation5], 1
    %750 = vsyncpa %s749, 1

</llo_original>
